<compile_context>
chip_gen: v7x
topology: tpu7x:2x2x1
jax: 0.10.0
libtpu: 0.0.40
codegen_flags: <defaults>
</compile_context>

<pallas_src>
import functools

import jax
import jax.numpy as jnp
import numpy as np
from jax.experimental import pallas as pl
from jax.experimental.pallas import tpu as pltpu

BINS = 10
ALPHA = 0.75


def _cdiv(a, b):
    return -(-a // b)


def _hist_beta_kernel(last_ref, x_ref, t_ref, state_ref, beta_ref, part_ref, *,
                      bins, numel, alpha, use_ema, need_mask):
    """Pass 1: gradient-norm histogram + (EMA, nonempty, gd, beta) glue.

    last_ref  : (bins, 1) VMEM — previous running bin count (zeros if unused).
    x_ref/t_ref: (TR, L) VMEM tiles of the lane-dense flattened inputs.
    state_ref : (bins, 1) VMEM output — updated running bin count (module state).
    beta_ref  : (bins, 1) VMEM output — per-bin weights N / gd.
    part_ref  : (bins, L) VMEM scratch — per-lane partial histogram, resident
                across the row-block grid (sublane-only reduces in the hot
                loop; the cross-lane reduces happen once at the end).
    """
    pid = pl.program_id(0)
    tr, nl = x_ref.shape

    @pl.when(pid == 0)
    def _():
        part_ref[...] = jnp.zeros_like(part_ref)

    x = x_ref[...].astype(jnp.float32)
    t = t_ref[...].astype(jnp.float32)
    g = jnp.abs(jax.nn.sigmoid(x) - t)                   # |custom_loss_grad|
    bin_idx = (g * (bins - 0.0001)).astype(jnp.int32)    # trunc == floor, g >= 0

    if need_mask:
        # Push padded-tail elements out of every bin (single select).
        row = jax.lax.broadcasted_iota(jnp.int32, (tr, nl), 0)
        lane = jax.lax.broadcasted_iota(jnp.int32, (tr, nl), 1)
        limit = numel - pid * (tr * nl)
        bin_idx = jnp.where(row * nl + lane < limit, bin_idx, bins)

    for i in range(bins):                                # bins is small/static
        m = (bin_idx == i).astype(jnp.float32)
        part_ref[pl.ds(i, 1), :] += jnp.sum(m, axis=0, keepdims=True)

    @pl.when(pid == pl.num_programs(0) - 1)
    def _():
        # Cross-lane reduce once: (bins, L) -> (bins, 1) raw histogram.
        hist = jnp.sum(part_ref[...], axis=1, keepdims=True)
        if use_ema:
            state = alpha * last_ref[...] + (1.0 - alpha) * hist
        else:
            state = hist
        state_ref[...] = state
        nonempty = jnp.sum((state > 0.0).astype(jnp.float32),
                           axis=0, keepdims=True)        # (1, 1)
        gd = jnp.maximum(state * nonempty, 0.0001)
        beta_ref[...] = jnp.float32(numel) / gd          # N = size(0)*size(1)


def _loss_kernel(beta_ref, x_ref, t_ref, loss_ref, acc_ref, *,
                 bins, numel, need_mask):
    """Pass 2: weighted BCE-with-logits, mean reduction.

    beta_ref : (bins, 1) SMEM — per-bin weights from pass 1.
    loss_ref : (1, 1) SMEM output.
    acc_ref  : (1, L) VMEM scratch — per-lane partial sum of weight * bce.
    """
    pid = pl.program_id(0)
    tr, nl = x_ref.shape

    @pl.when(pid == 0)
    def _():
        acc_ref[...] = jnp.zeros_like(acc_ref)

    x = x_ref[...].astype(jnp.float32)
    t = t_ref[...].astype(jnp.float32)
    g = jnp.abs(jax.nn.sigmoid(x) - t)
    bin_idx = (g * (bins - 0.0001)).astype(jnp.int32)

    # weight = beta[bin_idx] via select chain over the static (small) bin count.
    weight = jnp.zeros_like(x)
    for i in range(bins):
        weight = jnp.where(bin_idx == i, beta_ref[i, 0], weight)

    # numerically stable BCE with logits: max(x,0) - x*t + log(1 + exp(-|x|))
    bce = jnp.maximum(x, 0.0) - x * t + jnp.log1p(jnp.exp(-jnp.abs(x)))
    wb = weight * bce

    if need_mask:
        row = jax.lax.broadcasted_iota(jnp.int32, (tr, nl), 0)
        lane = jax.lax.broadcasted_iota(jnp.int32, (tr, nl), 1)
        limit = numel - pid * (tr * nl)
        wb = jnp.where(row * nl + lane < limit, wb, 0.0)

    acc_ref[...] += jnp.sum(wb, axis=0, keepdims=True)   # sublane-only reduce

    @pl.when(pid == pl.num_programs(0) - 1)
    def _():
        loss_ref[0, 0] = jnp.sum(acc_ref[...]) / jnp.float32(numel)


def ghm_loss(x, target, last_bin_count=None, *, bins=BINS, alpha=ALPHA,
             lanes=512, max_block_rows=512):
    """GHM-C loss forward. Returns (loss, new_bin_count).

    `last_bin_count` ((bins,) f32) replaces the PyTorch module's stateful
    `self._last_bin_count`; feed the returned state back on the next call.
    """
    assert x.ndim == 2 and x.shape == target.shape
    assert lanes % 128 == 0 and max_block_rows % 8 == 0
    M, C = x.shape
    numel = M * C                                  # N = x.size(0) * x.size(1)

    # Lane-dense layout: flatten -> (rows_padded, lanes), lanes multiple of 128.
    rows = _cdiv(numel, lanes)
    block_rows = min(max_block_rows, _cdiv(rows, 8) * 8)
    grid = _cdiv(rows, block_rows)
    rows_padded = grid * block_rows
    pad = rows_padded * lanes - numel
    need_mask = pad > 0

    xf = jnp.pad(x.reshape(-1).astype(jnp.float32), (0, pad))
    xf = xf.reshape(rows_padded, lanes)
    tf = jnp.pad(target.reshape(-1).astype(jnp.float32), (0, pad))
    tf = tf.reshape(rows_padded, lanes)

    use_ema = last_bin_count is not None
    last2d = (last_bin_count.astype(jnp.float32).reshape(bins, 1) if use_ema
              else jnp.zeros((bins, 1), jnp.float32))

    tile_spec = pl.BlockSpec((block_rows, lanes), lambda i: (i, 0))
    small_spec = pl.BlockSpec((bins, 1), lambda i: (0, 0))   # resident tiny block
    smem_spec = pl.BlockSpec(memory_space=pltpu.MemorySpace.SMEM)
    cparams = pltpu.CompilerParams(dimension_semantics=("arbitrary",))

    # ---- pass 1: histogram + EMA/nonempty/gd/beta glue (Pallas) ----
    new_state, beta = pl.pallas_call(
        functools.partial(_hist_beta_kernel, bins=bins, numel=numel,
                          alpha=alpha, use_ema=use_ema, need_mask=need_mask),
        out_shape=(jax.ShapeDtypeStruct((bins, 1), jnp.float32),
                   jax.ShapeDtypeStruct((bins, 1), jnp.float32)),
        grid=(grid,),
        in_specs=[small_spec, tile_spec, tile_spec],
        out_specs=(small_spec, small_spec),
        scratch_shapes=[pltpu.VMEM((bins, lanes), jnp.float32)],
        compiler_params=cparams,
    )(last2d, xf, tf)

    # ---- pass 2: weighted BCE-with-logits, mean reduction (Pallas) ----
    loss = pl.pallas_call(
        functools.partial(_loss_kernel, bins=bins, numel=numel,
                          need_mask=need_mask),
        out_shape=jax.ShapeDtypeStruct((1, 1), jnp.float32),
        grid=(grid,),
        in_specs=[smem_spec, tile_spec, tile_spec],
        out_specs=smem_spec,
        scratch_shapes=[pltpu.VMEM((1, lanes), jnp.float32)],
        compiler_params=cparams,
    )(beta, xf, tf)

    return loss[0, 0], new_state.reshape(bins)


def _ghm_loss_ref(x, target, last_bin_count=None, *, bins=BINS, alpha=ALPHA):
    """Pure-JAX reference mirroring the PyTorch forward (GHM-C variant)."""
    x = x.astype(jnp.float32)
    t = target.astype(jnp.float32)
    g = jnp.abs(jax.nn.sigmoid(x) - t)
    bin_idx = jnp.floor(g * (bins - 0.0001)).astype(jnp.int32)
    bin_count = jnp.sum(
        bin_idx[None, :, :] == jnp.arange(bins)[:, None, None], axis=(1, 2)
    ).astype(jnp.float32)
    if last_bin_count is not None:
        bin_count = alpha * last_bin_count + (1.0 - alpha) * bin_count
    n = x.shape[0] * x.shape[1]
    nonempty = jnp.sum(bin_count > 0).astype(jnp.float32)
    gd = jnp.maximum(bin_count * nonempty, 0.0001)
    beta = n / gd
    w = beta[bin_idx]
    bce = jnp.maximum(x, 0.0) - x * t + jnp.log1p(jnp.exp(-jnp.abs(x)))
    return jnp.sum(w * bce) / n, bin_count


if __name__ == "__main__":
    key = jax.random.PRNGKey(0)
    kx, kt, kx2, kx3, kt3 = jax.random.split(key, 5)

    # Small 2-D (batch, classes) shapes, matching the module's x.size(0/1) use.
    M, C = 8, 32
    x = jax.random.normal(kx, (M, C), dtype=jnp.float32)
    target = (jax.random.uniform(kt, (M, C)) > 0.5).astype(jnp.float32)

    # 1) first call (no running bin-count state yet)
    loss1, state1 = ghm_loss(x, target)
    ref1, rstate1 = _ghm_loss_ref(x, target)

    # 2) second call: exercises the EMA (momentum) path
    x2 = jax.random.normal(kx2, (M, C), dtype=jnp.float32)
    loss2, state2 = ghm_loss(x2, target, last_bin_count=state1)
    ref2, rstate2 = _ghm_loss_ref(x2, target, last_bin_count=rstate1)

    # 3) multi-block grid + padded-tail masking path
    M3, C3 = 16, 250
    x3 = jax.random.normal(kx3, (M3, C3), dtype=jnp.float32)
    t3 = (jax.random.uniform(kt3, (M3, C3)) > 0.5).astype(jnp.float32)
    loss3, state3 = ghm_loss(x3, t3, lanes=128, max_block_rows=8)
    ref3, rstate3 = _ghm_loss_ref(x3, t3)

    jax.block_until_ready((loss1, state1, loss2, state2, loss3, state3))

    np.testing.assert_allclose(np.asarray(state1), np.asarray(rstate1),
                               rtol=1e-6, atol=1e-6)
    np.testing.assert_allclose(np.asarray(state2), np.asarray(rstate2),
                               rtol=1e-6, atol=1e-6)
    np.testing.assert_allclose(np.asarray(state3), np.asarray(rstate3),
                               rtol=1e-6, atol=1e-6)
    np.testing.assert_allclose(float(loss1), float(ref1), rtol=2e-5, atol=1e-6)
    np.testing.assert_allclose(float(loss2), float(ref2), rtol=2e-5, atol=1e-6)
    np.testing.assert_allclose(float(loss3), float(ref3), rtol=2e-5, atol=1e-6)

    print("KERNEL_OK")
</pallas_src>

<mosaic_0001>
module attributes {stable_mosaic.version = 11 : i64} {
  func.func @_hist_beta_kernel(%arg0: i32, %arg1: memref<10x1xf32, #tpu.memory_space<vmem>>, %arg2: memref<8x512xf32, #tpu.memory_space<vmem>>, %arg3: memref<8x512xf32, #tpu.memory_space<vmem>>, %arg4: memref<10x1xf32, #tpu.memory_space<vmem>>, %arg5: memref<10x1xf32, #tpu.memory_space<vmem>>, %arg6: memref<10x512xf32, #tpu.memory_space<vmem>>) attributes {dimension_semantics = [#tpu.dimension_semantics<arbitrary>], iteration_bounds = array<i64: 1>, scalar_prefetch = 0 : i64, scratch_operands = 1 : i64, tpu.core_type = #tpu.core_type<tc>, window_params = [{pipeline_mode = #tpu.pipeline_mode<synchronous>, transform_indices = @transform_0, window_bounds = array<i64: 10, 1>}, {transform_indices = @transform_1, window_bounds = array<i64: 8, 512>}, {transform_indices = @transform_2, window_bounds = array<i64: 8, 512>}, {pipeline_mode = #tpu.pipeline_mode<synchronous>, transform_indices = @transform_3, window_bounds = array<i64: 10, 1>}, {pipeline_mode = #tpu.pipeline_mode<synchronous>, transform_indices = @transform_4, window_bounds = array<i64: 10, 1>}]} {
    %c0_i32 = arith.constant 0 : i32
    %0 = arith.cmpi eq, %arg0, %c0_i32 : i32
    %1 = arith.extui %0 : i1 to i32
    %c0_i32_0 = arith.constant 0 : i32
    %2 = arith.cmpi ne, %1, %c0_i32_0 : i32
    scf.if %2 {
      %cst_49 = arith.constant 0.000000e+00 : f32
      %119 = vector.broadcast %cst_49 : f32 to vector<10x512xf32>
      %c0_50 = arith.constant 0 : index
      %c0_51 = arith.constant 0 : index
      %120 = vector.load %arg6[%c0_50, %c0_51] : memref<10x512xf32, #tpu.memory_space<vmem>>, vector<10x512xf32>
      tpu.vector_store %arg6[%c0_50, %c0_51], %119 {strides = array<i32>} : memref<10x512xf32, #tpu.memory_space<vmem>>, vector<10x512xf32>,
    } else {
    }
    %c0 = arith.constant 0 : index
    %c0_1 = arith.constant 0 : index
    %3 = vector.load %arg2[%c0, %c0_1] : memref<8x512xf32, #tpu.memory_space<vmem>>, vector<8x512xf32>
    %c0_2 = arith.constant 0 : index
    %c0_3 = arith.constant 0 : index
    %4 = vector.load %arg3[%c0_2, %c0_3] : memref<8x512xf32, #tpu.memory_space<vmem>>, vector<8x512xf32>
    %5 = arith.negf %3 : vector<8x512xf32>
    %6 = math.exp %5 : vector<8x512xf32>
    %cst = arith.constant 1.000000e+00 : f32
    %7 = vector.broadcast %cst : f32 to vector<8x512xf32>
    %8 = arith.addf %7, %6 : vector<8x512xf32>
    %9 = arith.divf %7, %8 : vector<8x512xf32>
    %10 = arith.subf %9, %4 : vector<8x512xf32>
    %11 = math.absf %10 : vector<8x512xf32>
    %cst_4 = arith.constant 9.99989986 : f32
    %12 = vector.broadcast %cst_4 : f32 to vector<8x512xf32>
    %13 = arith.mulf %11, %12 : vector<8x512xf32>
    %14 = arith.fptosi %13 : vector<8x512xf32> to vector<8x512xi32>
    %15 = tpu.iota {dimensions = array<i32: 0>} : vector<8x512xi32>
    %16 = tpu.iota {dimensions = array<i32: 1>} : vector<8x512xi32>
    %c4096_i32 = arith.constant 4096 : i32
    %17 = arith.muli %arg0, %c4096_i32 : i32
    %c256_i32 = arith.constant 256 : i32
    %18 = arith.subi %c256_i32, %17 : i32
    %c512_i32 = arith.constant 512 : i32
    %19 = vector.broadcast %c512_i32 : i32 to vector<8x512xi32>
    %20 = arith.muli %15, %19 : vector<8x512xi32>
    %21 = arith.addi %20, %16 : vector<8x512xi32>
    %22 = vector.broadcast %18 : i32 to vector<8x512xi32>
    %23 = arith.cmpi slt, %21, %22 : vector<8x512xi32>
    %c10_i32 = arith.constant 10 : i32
    %24 = vector.broadcast %c10_i32 : i32 to vector<8x512xi32>
    %25 = arith.select %23, %14, %24 : vector<8x512xi1>, vector<8x512xi32>
    %c0_i32_5 = arith.constant 0 : i32
    %26 = vector.broadcast %c0_i32_5 : i32 to vector<8x512xi32>
    %27 = arith.cmpi eq, %25, %26 : vector<8x512xi32>
    %28 = arith.extui %27 : vector<8x512xi1> to vector<8x512xi32>
    %29 = arith.sitofp %28 : vector<8x512xi32> to vector<8x512xf32>
    %c0_6 = arith.constant 0 : index
    %c0_7 = arith.constant 0 : index
    %30 = vector.load %arg6[%c0_6, %c0_7] : memref<10x512xf32, #tpu.memory_space<vmem>>, vector<1x512xf32>
    %cst_8 = arith.constant dense<0.000000e+00> : vector<512xf32>
    %31 = vector.multi_reduction <add>, %29, %cst_8 [0] : vector<8x512xf32> to vector<512xf32>
    %32 = vector.shape_cast %31 : vector<512xf32> to vector<1x512xf32>
    %33 = arith.addf %30, %32 : vector<1x512xf32>
    %c0_9 = arith.constant 0 : index
    %c0_10 = arith.constant 0 : index
    %34 = vector.load %arg6[%c0_9, %c0_10] : memref<10x512xf32, #tpu.memory_space<vmem>>, vector<1x512xf32>
    tpu.vector_store %arg6[%c0_9, %c0_10], %33 {strides = array<i32>} : memref<10x512xf32, #tpu.memory_space<vmem>>, vector<1x512xf32>,
    %c1_i32 = arith.constant 1 : i32
    %35 = vector.broadcast %c1_i32 : i32 to vector<8x512xi32>
    %36 = arith.cmpi eq, %25, %35 : vector<8x512xi32>
    %37 = arith.extui %36 : vector<8x512xi1> to vector<8x512xi32>
    %38 = arith.sitofp %37 : vector<8x512xi32> to vector<8x512xf32>
    %c1 = arith.constant 1 : index
    %c0_11 = arith.constant 0 : index
    %39 = vector.load %arg6[%c1, %c0_11] : memref<10x512xf32, #tpu.memory_space<vmem>>, vector<1x512xf32>
    %cst_12 = arith.constant dense<0.000000e+00> : vector<512xf32>
    %40 = vector.multi_reduction <add>, %38, %cst_12 [0] : vector<8x512xf32> to vector<512xf32>
    %41 = vector.shape_cast %40 : vector<512xf32> to vector<1x512xf32>
    %42 = arith.addf %39, %41 : vector<1x512xf32>
    %c1_13 = arith.constant 1 : index
    %c0_14 = arith.constant 0 : index
    %43 = vector.load %arg6[%c1_13, %c0_14] : memref<10x512xf32, #tpu.memory_space<vmem>>, vector<1x512xf32>
    tpu.vector_store %arg6[%c1_13, %c0_14], %42 {strides = array<i32>} : memref<10x512xf32, #tpu.memory_space<vmem>>, vector<1x512xf32>,
    %c2_i32 = arith.constant 2 : i32
    %44 = vector.broadcast %c2_i32 : i32 to vector<8x512xi32>
    %45 = arith.cmpi eq, %25, %44 : vector<8x512xi32>
    %46 = arith.extui %45 : vector<8x512xi1> to vector<8x512xi32>
    %47 = arith.sitofp %46 : vector<8x512xi32> to vector<8x512xf32>
    %c2 = arith.constant 2 : index
    %c0_15 = arith.constant 0 : index
    %48 = vector.load %arg6[%c2, %c0_15] : memref<10x512xf32, #tpu.memory_space<vmem>>, vector<1x512xf32>
    %cst_16 = arith.constant dense<0.000000e+00> : vector<512xf32>
    %49 = vector.multi_reduction <add>, %47, %cst_16 [0] : vector<8x512xf32> to vector<512xf32>
    %50 = vector.shape_cast %49 : vector<512xf32> to vector<1x512xf32>
    %51 = arith.addf %48, %50 : vector<1x512xf32>
    %c2_17 = arith.constant 2 : index
    %c0_18 = arith.constant 0 : index
    %52 = vector.load %arg6[%c2_17, %c0_18] : memref<10x512xf32, #tpu.memory_space<vmem>>, vector<1x512xf32>
    tpu.vector_store %arg6[%c2_17, %c0_18], %51 {strides = array<i32>} : memref<10x512xf32, #tpu.memory_space<vmem>>, vector<1x512xf32>,
    %c3_i32 = arith.constant 3 : i32
    %53 = vector.broadcast %c3_i32 : i32 to vector<8x512xi32>
    %54 = arith.cmpi eq, %25, %53 : vector<8x512xi32>
    %55 = arith.extui %54 : vector<8x512xi1> to vector<8x512xi32>
    %56 = arith.sitofp %55 : vector<8x512xi32> to vector<8x512xf32>
    %c3 = arith.constant 3 : index
    %c0_19 = arith.constant 0 : index
    %57 = vector.load %arg6[%c3, %c0_19] : memref<10x512xf32, #tpu.memory_space<vmem>>, vector<1x512xf32>
    %cst_20 = arith.constant dense<0.000000e+00> : vector<512xf32>
    %58 = vector.multi_reduction <add>, %56, %cst_20 [0] : vector<8x512xf32> to vector<512xf32>
    %59 = vector.shape_cast %58 : vector<512xf32> to vector<1x512xf32>
    %60 = arith.addf %57, %59 : vector<1x512xf32>
    %c3_21 = arith.constant 3 : index
    %c0_22 = arith.constant 0 : index
    %61 = vector.load %arg6[%c3_21, %c0_22] : memref<10x512xf32, #tpu.memory_space<vmem>>, vector<1x512xf32>
    tpu.vector_store %arg6[%c3_21, %c0_22], %60 {strides = array<i32>} : memref<10x512xf32, #tpu.memory_space<vmem>>, vector<1x512xf32>,
    %c4_i32 = arith.constant 4 : i32
    %62 = vector.broadcast %c4_i32 : i32 to vector<8x512xi32>
    %63 = arith.cmpi eq, %25, %62 : vector<8x512xi32>
    %64 = arith.extui %63 : vector<8x512xi1> to vector<8x512xi32>
    %65 = arith.sitofp %64 : vector<8x512xi32> to vector<8x512xf32>
    %c4 = arith.constant 4 : index
    %c0_23 = arith.constant 0 : index
    %66 = vector.load %arg6[%c4, %c0_23] : memref<10x512xf32, #tpu.memory_space<vmem>>, vector<1x512xf32>
    %cst_24 = arith.constant dense<0.000000e+00> : vector<512xf32>
    %67 = vector.multi_reduction <add>, %65, %cst_24 [0] : vector<8x512xf32> to vector<512xf32>
    %68 = vector.shape_cast %67 : vector<512xf32> to vector<1x512xf32>
    %69 = arith.addf %66, %68 : vector<1x512xf32>
    %c4_25 = arith.constant 4 : index
    %c0_26 = arith.constant 0 : index
    %70 = vector.load %arg6[%c4_25, %c0_26] : memref<10x512xf32, #tpu.memory_space<vmem>>, vector<1x512xf32>
    tpu.vector_store %arg6[%c4_25, %c0_26], %69 {strides = array<i32>} : memref<10x512xf32, #tpu.memory_space<vmem>>, vector<1x512xf32>,
    %c5_i32 = arith.constant 5 : i32
    %71 = vector.broadcast %c5_i32 : i32 to vector<8x512xi32>
    %72 = arith.cmpi eq, %25, %71 : vector<8x512xi32>
    %73 = arith.extui %72 : vector<8x512xi1> to vector<8x512xi32>
    %74 = arith.sitofp %73 : vector<8x512xi32> to vector<8x512xf32>
    %c5 = arith.constant 5 : index
    %c0_27 = arith.constant 0 : index
    %75 = vector.load %arg6[%c5, %c0_27] : memref<10x512xf32, #tpu.memory_space<vmem>>, vector<1x512xf32>
    %cst_28 = arith.constant dense<0.000000e+00> : vector<512xf32>
    %76 = vector.multi_reduction <add>, %74, %cst_28 [0] : vector<8x512xf32> to vector<512xf32>
    %77 = vector.shape_cast %76 : vector<512xf32> to vector<1x512xf32>
    %78 = arith.addf %75, %77 : vector<1x512xf32>
    %c5_29 = arith.constant 5 : index
    %c0_30 = arith.constant 0 : index
    %79 = vector.load %arg6[%c5_29, %c0_30] : memref<10x512xf32, #tpu.memory_space<vmem>>, vector<1x512xf32>
    tpu.vector_store %arg6[%c5_29, %c0_30], %78 {strides = array<i32>} : memref<10x512xf32, #tpu.memory_space<vmem>>, vector<1x512xf32>,
    %c6_i32 = arith.constant 6 : i32
    %80 = vector.broadcast %c6_i32 : i32 to vector<8x512xi32>
    %81 = arith.cmpi eq, %25, %80 : vector<8x512xi32>
    %82 = arith.extui %81 : vector<8x512xi1> to vector<8x512xi32>
    %83 = arith.sitofp %82 : vector<8x512xi32> to vector<8x512xf32>
    %c6 = arith.constant 6 : index
    %c0_31 = arith.constant 0 : index
    %84 = vector.load %arg6[%c6, %c0_31] : memref<10x512xf32, #tpu.memory_space<vmem>>, vector<1x512xf32>
    %cst_32 = arith.constant dense<0.000000e+00> : vector<512xf32>
    %85 = vector.multi_reduction <add>, %83, %cst_32 [0] : vector<8x512xf32> to vector<512xf32>
    %86 = vector.shape_cast %85 : vector<512xf32> to vector<1x512xf32>
    %87 = arith.addf %84, %86 : vector<1x512xf32>
    %c6_33 = arith.constant 6 : index
    %c0_34 = arith.constant 0 : index
    %88 = vector.load %arg6[%c6_33, %c0_34] : memref<10x512xf32, #tpu.memory_space<vmem>>, vector<1x512xf32>
    tpu.vector_store %arg6[%c6_33, %c0_34], %87 {strides = array<i32>} : memref<10x512xf32, #tpu.memory_space<vmem>>, vector<1x512xf32>,
    %c7_i32 = arith.constant 7 : i32
    %89 = vector.broadcast %c7_i32 : i32 to vector<8x512xi32>
    %90 = arith.cmpi eq, %25, %89 : vector<8x512xi32>
    %91 = arith.extui %90 : vector<8x512xi1> to vector<8x512xi32>
    %92 = arith.sitofp %91 : vector<8x512xi32> to vector<8x512xf32>
    %c7 = arith.constant 7 : index
    %c0_35 = arith.constant 0 : index
    %93 = vector.load %arg6[%c7, %c0_35] : memref<10x512xf32, #tpu.memory_space<vmem>>, vector<1x512xf32>
    %cst_36 = arith.constant dense<0.000000e+00> : vector<512xf32>
    %94 = vector.multi_reduction <add>, %92, %cst_36 [0] : vector<8x512xf32> to vector<512xf32>
    %95 = vector.shape_cast %94 : vector<512xf32> to vector<1x512xf32>
    %96 = arith.addf %93, %95 : vector<1x512xf32>
    %c7_37 = arith.constant 7 : index
    %c0_38 = arith.constant 0 : index
    %97 = vector.load %arg6[%c7_37, %c0_38] : memref<10x512xf32, #tpu.memory_space<vmem>>, vector<1x512xf32>
    tpu.vector_store %arg6[%c7_37, %c0_38], %96 {strides = array<i32>} : memref<10x512xf32, #tpu.memory_space<vmem>>, vector<1x512xf32>,
    %c8_i32 = arith.constant 8 : i32
    %98 = vector.broadcast %c8_i32 : i32 to vector<8x512xi32>
    %99 = arith.cmpi eq, %25, %98 : vector<8x512xi32>
    %100 = arith.extui %99 : vector<8x512xi1> to vector<8x512xi32>
    %101 = arith.sitofp %100 : vector<8x512xi32> to vector<8x512xf32>
    %c8 = arith.constant 8 : index
    %c0_39 = arith.constant 0 : index
    %102 = vector.load %arg6[%c8, %c0_39] : memref<10x512xf32, #tpu.memory_space<vmem>>, vector<1x512xf32>
    %cst_40 = arith.constant dense<0.000000e+00> : vector<512xf32>
    %103 = vector.multi_reduction <add>, %101, %cst_40 [0] : vector<8x512xf32> to vector<512xf32>
    %104 = vector.shape_cast %103 : vector<512xf32> to vector<1x512xf32>
    %105 = arith.addf %102, %104 : vector<1x512xf32>
    %c8_41 = arith.constant 8 : index
    %c0_42 = arith.constant 0 : index
    %106 = vector.load %arg6[%c8_41, %c0_42] : memref<10x512xf32, #tpu.memory_space<vmem>>, vector<1x512xf32>
    tpu.vector_store %arg6[%c8_41, %c0_42], %105 {strides = array<i32>} : memref<10x512xf32, #tpu.memory_space<vmem>>, vector<1x512xf32>,
    %c9_i32 = arith.constant 9 : i32
    %107 = vector.broadcast %c9_i32 : i32 to vector<8x512xi32>
    %108 = arith.cmpi eq, %25, %107 : vector<8x512xi32>
    %109 = arith.extui %108 : vector<8x512xi1> to vector<8x512xi32>
    %110 = arith.sitofp %109 : vector<8x512xi32> to vector<8x512xf32>
    %c9 = arith.constant 9 : index
    %c0_43 = arith.constant 0 : index
    %111 = vector.load %arg6[%c9, %c0_43] : memref<10x512xf32, #tpu.memory_space<vmem>>, vector<1x512xf32>
    %cst_44 = arith.constant dense<0.000000e+00> : vector<512xf32>
    %112 = vector.multi_reduction <add>, %110, %cst_44 [0] : vector<8x512xf32> to vector<512xf32>
    %113 = vector.shape_cast %112 : vector<512xf32> to vector<1x512xf32>
    %114 = arith.addf %111, %113 : vector<1x512xf32>
    %c9_45 = arith.constant 9 : index
    %c0_46 = arith.constant 0 : index
    %115 = vector.load %arg6[%c9_45, %c0_46] : memref<10x512xf32, #tpu.memory_space<vmem>>, vector<1x512xf32>
    tpu.vector_store %arg6[%c9_45, %c0_46], %114 {strides = array<i32>} : memref<10x512xf32, #tpu.memory_space<vmem>>, vector<1x512xf32>,
    %c0_i32_47 = arith.constant 0 : i32
    %116 = arith.cmpi eq, %arg0, %c0_i32_47 : i32
    %117 = arith.extui %116 : i1 to i32
    %c0_i32_48 = arith.constant 0 : i32
    %118 = arith.cmpi ne, %117, %c0_i32_48 : i32
    scf.if %118 {
      %c0_49 = arith.constant 0 : index
      %c0_50 = arith.constant 0 : index
      %119 = vector.load %arg6[%c0_49, %c0_50] : memref<10x512xf32, #tpu.memory_space<vmem>>, vector<10x512xf32>
      %cst_51 = arith.constant dense<0.000000e+00> : vector<10xf32>
      %120 = vector.multi_reduction <add>, %119, %cst_51 [1] : vector<10x512xf32> to vector<10xf32>
      %121 = vector.shape_cast %120 : vector<10xf32> to vector<10x1xf32>
      %c0_52 = arith.constant 0 : index
      %c0_53 = arith.constant 0 : index
      %122 = vector.load %arg4[%c0_52, %c0_53] : memref<10x1xf32, #tpu.memory_space<vmem>>, vector<10x1xf32>
      tpu.vector_store %arg4[%c0_52, %c0_53], %121 {strides = array<i32>} : memref<10x1xf32, #tpu.memory_space<vmem>>, vector<10x1xf32>,
      %cst_54 = arith.constant 0.000000e+00 : f32
      %123 = vector.broadcast %cst_54 : f32 to vector<10x1xf32>
      %124 = arith.cmpf ogt, %121, %123 : vector<10x1xf32>
      %125 = arith.extui %124 : vector<10x1xi1> to vector<10x1xi32>
      %126 = arith.sitofp %125 : vector<10x1xi32> to vector<10x1xf32>
      %cst_55 = arith.constant dense<0.000000e+00> : vector<1xf32>
      %127 = vector.multi_reduction <add>, %126, %cst_55 [0] : vector<10x1xf32> to vector<1xf32>
      %128 = vector.shape_cast %127 : vector<1xf32> to vector<1x1xf32>
      %129 = vector.broadcast %128 : vector<1x1xf32> to vector<10x1xf32>
      %130 = arith.mulf %121, %129 : vector<10x1xf32>
      %cst_56 = arith.constant 9.99999974E-5 : f32
      %131 = vector.broadcast %cst_56 : f32 to vector<10x1xf32>
      %132 = arith.maximumf %130, %131 : vector<10x1xf32>
      %cst_57 = arith.constant 2.560000e+02 : f32
      %133 = vector.broadcast %cst_57 : f32 to vector<10x1xf32>
      %134 = arith.divf %133, %132 : vector<10x1xf32>
      %c0_58 = arith.constant 0 : index
      %c0_59 = arith.constant 0 : index
      %135 = vector.load %arg5[%c0_58, %c0_59] : memref<10x1xf32, #tpu.memory_space<vmem>>, vector<10x1xf32>
      tpu.vector_store %arg5[%c0_58, %c0_59], %134 {strides = array<i32>} : memref<10x1xf32, #tpu.memory_space<vmem>>, vector<10x1xf32>,
    } else {
    }
    return
  }
  func.func @transform_0(%arg0: i32) -> (i32, i32) {
    %c0_i32 = arith.constant 0 : i32
    %c0_i32_0 = arith.constant 0 : i32
    %c0_i32_1 = arith.constant 0 : i32
    return %c0_i32, %c0_i32_0 : i32, i32
  }
  func.func @transform_1(%arg0: i32) -> (i32, i32) {
    %c0_i32 = arith.constant 0 : i32
    %c0_i32_0 = arith.constant 0 : i32
    return %arg0, %c0_i32 : i32, i32
  }
  func.func @transform_2(%arg0: i32) -> (i32, i32) {
    %c0_i32 = arith.constant 0 : i32
    %c0_i32_0 = arith.constant 0 : i32
    return %arg0, %c0_i32 : i32, i32
  }
  func.func @transform_3(%arg0: i32) -> (i32, i32) {
    %c0_i32 = arith.constant 0 : i32
    %c0_i32_0 = arith.constant 0 : i32
    %c0_i32_1 = arith.constant 0 : i32
    return %c0_i32, %c0_i32_0 : i32, i32
  }
  func.func @transform_4(%arg0: i32) -> (i32, i32) {
    %c0_i32 = arith.constant 0 : i32
    %c0_i32_0 = arith.constant 0 : i32
    %c0_i32_1 = arith.constant 0 : i32
    return %c0_i32, %c0_i32_0 : i32, i32
  }
}

</mosaic_0001>

<llo_original>
// kernel: tpu_custom_call.1
$region0: #{tpu_custom_call.1}
  #allocation0 [shape = 'u32[]', space=smem, size = 0x4, offset = 0x4, fixed_abs, tag = 'smem constant byte address 0x4 - core index']
  #allocation1 [shape = 'u32[144,128]{1,0:T(1,128)}', space=vmem, size = 0x12000, scoped, tag = 'internal scratch']
  #allocation2 [shape = 'f32[10,512]{1,0:T(8,128)}', space=vmem, size = 0x8000, scoped, tag = 'scratch operand']
  %s0 = inlined_call_operand.vmem [shape: f32[10,1], index: 0, kind: input, shape index: {}]
  %s1 = inlined_call_operand.hbm [shape: f32[8,512], index: 1, kind: input, shape index: {}]
  %s2 = inlined_call_operand.hbm [shape: f32[8,512], index: 2, kind: input, shape index: {}]
  %s3 = inlined_call_operand.vmem [shape: f32[10,1], index: 3, kind: output, shape index: {0}]
  %s4 = inlined_call_operand.vmem [shape: f32[10,1], index: 4, kind: output, shape index: {1}]
  %5 = xla_tuple %s3, %s4
  %s6 = sld [smem:[#allocation0]]
  $region46: #{tpu_custom_call.1} parent=0
    _
  %s8 = ssub.s32 1, %s6
  %s9 = scalar_select 0, %s8, %s6
  $region1: #{tpu_custom_call.1} parent=0
    #allocation3 [shape = 'u8[16384]{0}', space=vmem, size = 0x4000, scoped, tag = 'input window, operand 1, single buffered']
    #allocation4 [shape = 's32[1]{0}', space=sflag, size = 0x4, scoped, tag = 'scoped memory for tpu_custom_call.1']
    #allocation5 [shape = 'u8[16384]{0}', space=vmem, size = 0x4000, scoped, tag = 'input window, operand 2, single buffered']
    #allocation6 [shape = 's32[1]{0}', space=sflag, size = 0x4, scoped, tag = 'scoped memory for tpu_custom_call.1']
    %10 = vsyncpa [#allocation4], 0
    %11 = vsyncpa [#allocation6], 0
    // Predicated region
    $region2: #{tpu_custom_call.1} parent=1 // pred_check
      _
    $region3: #{tpu_custom_call.1} parent=1 // pred_check_branch
      %13 = sbr.rel (0) target = $region5
    $region4: #{tpu_custom_call.1} parent=1 // pred_region
      _
    $region5: #{tpu_custom_call.1} parent=1 // pred_fallthru
      _
    // Predicated region
    $region6: #{tpu_custom_call.1} parent=1 // pred_check
      _
    $region7: #{tpu_custom_call.1} parent=1 // pred_check_branch
      %15 = sbr.rel (0) target = $region9
    $region8: #{tpu_custom_call.1} parent=1 // pred_region
      %s17 = ssub.s32 512, 512
      %18 = vsyncadd [#allocation4], %s17
      %s20 = sshll.u32 [#allocation3], 4
      %s21 = int_to_ptr.vmem [resolvable:$true] %s20
      %23 = dma.hbm_to_vmem [thread:$0]  %s1, 512, %s21, [#allocation4]
    $region9: #{tpu_custom_call.1} parent=1 // pred_fallthru
      _
    // Predicated region
    $region10: #{tpu_custom_call.1} parent=1 // pred_check
      _
    $region11: #{tpu_custom_call.1} parent=1 // pred_check_branch
      %25 = sbr.rel (0) target = $region13
    $region12: #{tpu_custom_call.1} parent=1 // pred_region
      %s27 = ssub.s32 512, 512
      %28 = vsyncadd [#allocation6], %s27
      %s30 = sshll.u32 [#allocation5], 4
      %s31 = int_to_ptr.vmem [resolvable:$true] %s30
      %33 = dma.hbm_to_vmem [thread:$0]  %s2, 512, %s31, [#allocation6]
    $region13: #{tpu_custom_call.1} parent=1 // pred_fallthru
      _
    // Predicated region
    $region14: #{tpu_custom_call.1} parent=1 // pred_check
      _
    $region15: #{tpu_custom_call.1} parent=1 // pred_check_branch
      %35 = sbr.rel (0) target = $region17
    $region16: #{tpu_custom_call.1} parent=1 // pred_region
      %36 = dma.done [#allocation4], 512
    $region17: #{tpu_custom_call.1} parent=1 // pred_fallthru
      _
    // Predicated region
    $region18: #{tpu_custom_call.1} parent=1 // pred_check
      _
    $region19: #{tpu_custom_call.1} parent=1 // pred_check_branch
      %38 = sbr.rel (0) target = $region21
    $region20: #{tpu_custom_call.1} parent=1 // pred_region
      %39 = dma.done [#allocation6], 512
    $region21: #{tpu_custom_call.1} parent=1 // pred_fallthru
      _
    %p40 = scmp.eq.s32.totalorder 0, 0
    // Predicated region
    $region22: #{tpu_custom_call.1} parent=1 // pred_check
      %p41 = pneg %p40
    $region23: #{tpu_custom_call.1} parent=1 // pred_check_branch
      %43 = sbr.rel (%p41) target = $region25
    $region24: #{tpu_custom_call.1} parent=1 // pred_region
      %44 = vst [vmem:[#allocation2] sm:$0xff] 0.0
      %45 = vst [vmem:[#allocation2 + $0x8] sm:$0xff] 0.0
      %46 = vst [vmem:[#allocation2 + $0x10] sm:$0xff] 0.0
      %47 = vst [vmem:[#allocation2 + $0x18] sm:$0xff] 0.0
      %48 = vst [vmem:[#allocation2 + $0x20] sm:$0x3] 0.0
      %49 = vst [vmem:[#allocation2 + $0x28] sm:$0x3] 0.0
      %50 = vst [vmem:[#allocation2 + $0x30] sm:$0x3] 0.0
      %51 = vst [vmem:[#allocation2 + $0x38] sm:$0x3] 0.0
    $region25: #{tpu_custom_call.1} parent=1 // pred_fallthru
      _
    %v52 = vld [vmem:[#allocation3] sm:$0xff]
    %v53 = vld [vmem:[#allocation3 + $0x8] sm:$0xff]
    %v54 = vld [vmem:[#allocation3 + $0x10] sm:$0xff]
    %v55 = vld [vmem:[#allocation3 + $0x18] sm:$0xff]
    %v56 = vld [vmem:[#allocation5] sm:$0xff]
    %v57 = vld [vmem:[#allocation5 + $0x8] sm:$0xff]
    %v58 = vld [vmem:[#allocation5 + $0x10] sm:$0xff]
    %v59 = vld [vmem:[#allocation5 + $0x18] sm:$0xff]
    %v60 = vxor.u32 %v52, 2147483648
    %v61 = vxor.u32 %v53, 2147483648
    %v62 = vxor.u32 %v54, 2147483648
    %v63 = vxor.u32 %v55, 2147483648
    %v64 = vmul.f32 %v60, 1.442695
    %v65 = vpow.pop %v64
    %v66 = vmul.f32 %v61, 1.442695
    %v67 = vpow.pop %v66
    %v68 = vmul.f32 %v62, 1.442695
    %v69 = vpow.pop %v68
    %v70 = vmul.f32 %v63, 1.442695
    %v71 = vpow.pop %v70
    %v72 = vadd.f32 %v65, 1.0
    %v73 = vadd.f32 %v67, 1.0
    %v74 = vadd.f32 %v69, 1.0
    %v75 = vadd.f32 %v71, 1.0
    %v76 = vrcp.pop %v72
    %v77 = vmul.f32 1.0, %v76
    %v78 = vrcp.pop %v73
    %v79 = vmul.f32 1.0, %v78
    %v80 = vrcp.pop %v74
    %v81 = vmul.f32 1.0, %v80
    %v82 = vrcp.pop %v75
    %v83 = vmul.f32 1.0, %v82
    %v84 = vsub.f32 %v77, %v56
    %v85 = vsub.f32 %v79, %v57
    %v86 = vsub.f32 %v81, %v58
    %v87 = vsub.f32 %v83, %v59
    %v88 = vand.u32 2147483647, %v84
    %v89 = vand.u32 2147483647, %v85
    %v90 = vand.u32 2147483647, %v86
    %v91 = vand.u32 2147483647, %v87
    %v92 = vmul.f32 %v88, 9.9999
    %v93 = vmul.f32 %v89, 9.9999
    %v94 = vmul.f32 %v90, 9.9999
    %v95 = vmul.f32 %v91, 9.9999
    %v96 = vcvt.f32.s32.to.zero.pseudo %v92
    %v97 = vcvt.f32.s32.to.zero.pseudo %v93
    %v98 = vcvt.f32.s32.to.zero.pseudo %v94
    %v99 = vcvt.f32.s32.to.zero.pseudo %v95
    %v100 = vlaneseq
    %v101 = vshrl.u32 %v100, 7
    %v102 = vlaneseq
    %v103 = vand.u32 %v102, 127
    %v104 = vadd.s32 %v103, 128
    %v105 = vadd.s32 %v103, 256
    %v106 = vadd.s32 %v103, 384
    %s107 = smul.u32 0, 4096
    %s108 = ssub.s32 256, %s107
    %v109 = vmul.u32 %v101, 512
    %v110 = vadd.s32 %v109, %v103
    %v111 = vadd.s32 %v109, %v104
    %v112 = vadd.s32 %v109, %v105
    %v113 = vadd.s32 %v109, %v106
    %v114 = vstv %s108
    %vm115 = vcmp.lt.s32.totalorder %v110, %v114
    %vm116 = vcmp.lt.s32.totalorder %v111, %v114
    %vm117 = vcmp.lt.s32.totalorder %v112, %v114
    %vm118 = vcmp.lt.s32.totalorder %v113, %v114
    %v119 = vsel %vm115, %v96, 10
    %v120 = vsel %vm116, %v97, 10
    %v121 = vsel %vm117, %v98, 10
    %v122 = vsel %vm118, %v99, 10
    %vm123 = vcmp.eq.s32.totalorder %v119, 0
    %vm124 = vcmp.eq.s32.totalorder %v120, 0
    %vm125 = vcmp.eq.s32.totalorder %v121, 0
    %vm126 = vcmp.eq.s32.totalorder %v122, 0
    %v127 = vsel %vm123, 1, 0
    %v128 = vsel %vm124, 1, 0
    %v129 = vsel %vm125, 1, 0
    %v130 = vsel %vm126, 1, 0
    %v131 = vcvt.s32.f32 %v127
    %v132 = vcvt.s32.f32 %v128
    %v133 = vcvt.s32.f32 %v129
    %v134 = vcvt.s32.f32 %v130
    %v135 = vld [vmem:[#allocation2] ss:$8 sm:$0xf]
    %v136 = vrot.slane %v131, 4
    %v137 = vadd.f32 %v131, %v136
    %v138 = vrot.slane %v137, 2
    %v139 = vadd.f32 %v137, %v138
    %v140 = vrot.slane %v139, 1
    %v141 = vadd.f32 %v139, %v140
    %v142 = vrot.slane %v132, 4
    %v143 = vadd.f32 %v132, %v142
    %v144 = vrot.slane %v143, 2
    %v145 = vadd.f32 %v143, %v144
    %v146 = vrot.slane %v145, 1
    %v147 = vadd.f32 %v145, %v146
    %v148 = vrot.slane %v133, 4
    %v149 = vadd.f32 %v133, %v148
    %v150 = vrot.slane %v149, 2
    %v151 = vadd.f32 %v149, %v150
    %v152 = vrot.slane %v151, 1
    %v153 = vadd.f32 %v151, %v152
    %v154 = vrot.slane %v134, 4
    %v155 = vadd.f32 %v134, %v154
    %v156 = vrot.slane %v155, 2
    %v157 = vadd.f32 %v155, %v156
    %v158 = vrot.slane %v157, 1
    %v159 = vadd.f32 %v157, %v158
    %v164 = vcombine.low %v141, %v147
    %v165 = vcombine.low %v153, %v159
    %v167 = vunpack.c.l.s4 1966171168
    %v168 = vunpack.c.0.s8 %v167
    %v169 = vlaneseq
    %v170 = vshrl.u32 %v169, 7
    %v171 = vsub.s32 %v168, %v170
    %v172 = vrot.slane %v164, %v171
    %v174 = vunpack.c.l.s4 1966171168
    %v175 = vunpack.c.0.s8 %v174
    %v176 = vlaneseq
    %v177 = vshrl.u32 %v176, 7
    %v178 = vsub.s32 %v175, %v177
    %v179 = vrot.slane %v165, %v178
    %v180 = vcombine.low %v172, %v179
    %v182 = vunpack.c.l.s4 1966171168
    %v183 = vunpack.c.0.s8 %v182
    %v184 = vlaneseq
    %v185 = vshrl.u32 %v184, 7
    %v186 = vsub.s32 %v183, %v185
    %v187 = vrot.slane %v180, %v186
    %v189 = vadd.f32 %v135, %v187
    %v190 = vlaneseq
    %vm191 = vcmp.ge.s32.totalorder %v190, 0
    %vm192 = vcmp.lt.s32.totalorder %v190, 512
    %vm193 = vmand %vm191, %vm192
    %194 = vst.msk [vmem:[#allocation2] ss:$8 sm:$0xf] %vm193, %v189
    %195 = vst.msk [vmem:[#allocation2] ss:$8 sm:$0x0] %vm193, %v189
    %vm196 = vcmp.eq.s32.totalorder %v119, 1
    %vm197 = vcmp.eq.s32.totalorder %v120, 1
    %vm198 = vcmp.eq.s32.totalorder %v121, 1
    %vm199 = vcmp.eq.s32.totalorder %v122, 1
    %v200 = vsel %vm196, 1, 0
    %v201 = vsel %vm197, 1, 0
    %v202 = vsel %vm198, 1, 0
    %v203 = vsel %vm199, 1, 0
    %v204 = vcvt.s32.f32 %v200
    %v205 = vcvt.s32.f32 %v201
    %v206 = vcvt.s32.f32 %v202
    %v207 = vcvt.s32.f32 %v203
    %s208 = scalar_lea.vmem [#allocation2], 1
    %v209 = vld [vmem:[%s208] ss:$8 sm:$0xf]
    %v210 = vrot.slane %v204, 4
    %v211 = vadd.f32 %v204, %v210
    %v212 = vrot.slane %v211, 2
    %v213 = vadd.f32 %v211, %v212
    %v214 = vrot.slane %v213, 1
    %v215 = vadd.f32 %v213, %v214
    %v216 = vrot.slane %v205, 4
    %v217 = vadd.f32 %v205, %v216
    %v218 = vrot.slane %v217, 2
    %v219 = vadd.f32 %v217, %v218
    %v220 = vrot.slane %v219, 1
    %v221 = vadd.f32 %v219, %v220
    %v222 = vrot.slane %v206, 4
    %v223 = vadd.f32 %v206, %v222
    %v224 = vrot.slane %v223, 2
    %v225 = vadd.f32 %v223, %v224
    %v226 = vrot.slane %v225, 1
    %v227 = vadd.f32 %v225, %v226
    %v228 = vrot.slane %v207, 4
    %v229 = vadd.f32 %v207, %v228
    %v230 = vrot.slane %v229, 2
    %v231 = vadd.f32 %v229, %v230
    %v232 = vrot.slane %v231, 1
    %v233 = vadd.f32 %v231, %v232
    %v238 = vcombine.low %v215, %v221
    %v239 = vcombine.low %v227, %v233
    %v241 = vunpack.c.l.s4 1966171168
    %v242 = vunpack.c.0.s8 %v241
    %v243 = vlaneseq
    %v244 = vshrl.u32 %v243, 7
    %v245 = vsub.s32 %v242, %v244
    %v246 = vrot.slane %v238, %v245
    %v248 = vunpack.c.l.s4 1966171168
    %v249 = vunpack.c.0.s8 %v248
    %v250 = vlaneseq
    %v251 = vshrl.u32 %v250, 7
    %v252 = vsub.s32 %v249, %v251
    %v253 = vrot.slane %v239, %v252
    %v254 = vcombine.low %v246, %v253
    %v256 = vunpack.c.l.s4 1966171168
    %v257 = vunpack.c.0.s8 %v256
    %v258 = vlaneseq
    %v259 = vshrl.u32 %v258, 7
    %v260 = vsub.s32 %v257, %v259
    %v261 = vrot.slane %v254, %v260
    %v263 = vadd.f32 %v209, %v261
    %264 = vst.msk [vmem:[%s208] ss:$8 sm:$0xf] %vm193, %v263
    %265 = vst.msk [vmem:[%s208] ss:$8 sm:$0x0] %vm193, %v263
    %vm266 = vcmp.eq.s32.totalorder %v119, 2
    %vm267 = vcmp.eq.s32.totalorder %v120, 2
    %vm268 = vcmp.eq.s32.totalorder %v121, 2
    %vm269 = vcmp.eq.s32.totalorder %v122, 2
    %v270 = vsel %vm266, 1, 0
    %v271 = vsel %vm267, 1, 0
    %v272 = vsel %vm268, 1, 0
    %v273 = vsel %vm269, 1, 0
    %v274 = vcvt.s32.f32 %v270
    %v275 = vcvt.s32.f32 %v271
    %v276 = vcvt.s32.f32 %v272
    %v277 = vcvt.s32.f32 %v273
    %s278 = scalar_lea.vmem [#allocation2], 2
    %v279 = vld [vmem:[%s278] ss:$8 sm:$0xf]
    %v280 = vrot.slane %v274, 4
    %v281 = vadd.f32 %v274, %v280
    %v282 = vrot.slane %v281, 2
    %v283 = vadd.f32 %v281, %v282
    %v284 = vrot.slane %v283, 1
    %v285 = vadd.f32 %v283, %v284
    %v286 = vrot.slane %v275, 4
    %v287 = vadd.f32 %v275, %v286
    %v288 = vrot.slane %v287, 2
    %v289 = vadd.f32 %v287, %v288
    %v290 = vrot.slane %v289, 1
    %v291 = vadd.f32 %v289, %v290
    %v292 = vrot.slane %v276, 4
    %v293 = vadd.f32 %v276, %v292
    %v294 = vrot.slane %v293, 2
    %v295 = vadd.f32 %v293, %v294
    %v296 = vrot.slane %v295, 1
    %v297 = vadd.f32 %v295, %v296
    %v298 = vrot.slane %v277, 4
    %v299 = vadd.f32 %v277, %v298
    %v300 = vrot.slane %v299, 2
    %v301 = vadd.f32 %v299, %v300
    %v302 = vrot.slane %v301, 1
    %v303 = vadd.f32 %v301, %v302
    %v308 = vcombine.low %v285, %v291
    %v309 = vcombine.low %v297, %v303
    %v311 = vunpack.c.l.s4 1966171168
    %v312 = vunpack.c.0.s8 %v311
    %v313 = vlaneseq
    %v314 = vshrl.u32 %v313, 7
    %v315 = vsub.s32 %v312, %v314
    %v316 = vrot.slane %v308, %v315
    %v318 = vunpack.c.l.s4 1966171168
    %v319 = vunpack.c.0.s8 %v318
    %v320 = vlaneseq
    %v321 = vshrl.u32 %v320, 7
    %v322 = vsub.s32 %v319, %v321
    %v323 = vrot.slane %v309, %v322
    %v324 = vcombine.low %v316, %v323
    %v326 = vunpack.c.l.s4 1966171168
    %v327 = vunpack.c.0.s8 %v326
    %v328 = vlaneseq
    %v329 = vshrl.u32 %v328, 7
    %v330 = vsub.s32 %v327, %v329
    %v331 = vrot.slane %v324, %v330
    %v333 = vadd.f32 %v279, %v331
    %334 = vst.msk [vmem:[%s278] ss:$8 sm:$0xf] %vm193, %v333
    %335 = vst.msk [vmem:[%s278] ss:$8 sm:$0x0] %vm193, %v333
    %vm336 = vcmp.eq.s32.totalorder %v119, 3
    %vm337 = vcmp.eq.s32.totalorder %v120, 3
    %vm338 = vcmp.eq.s32.totalorder %v121, 3
    %vm339 = vcmp.eq.s32.totalorder %v122, 3
    %v340 = vsel %vm336, 1, 0
    %v341 = vsel %vm337, 1, 0
    %v342 = vsel %vm338, 1, 0
    %v343 = vsel %vm339, 1, 0
    %v344 = vcvt.s32.f32 %v340
    %v345 = vcvt.s32.f32 %v341
    %v346 = vcvt.s32.f32 %v342
    %v347 = vcvt.s32.f32 %v343
    %s348 = scalar_lea.vmem [#allocation2], 3
    %v349 = vld [vmem:[%s348] ss:$8 sm:$0xf]
    %v350 = vrot.slane %v344, 4
    %v351 = vadd.f32 %v344, %v350
    %v352 = vrot.slane %v351, 2
    %v353 = vadd.f32 %v351, %v352
    %v354 = vrot.slane %v353, 1
    %v355 = vadd.f32 %v353, %v354
    %v356 = vrot.slane %v345, 4
    %v357 = vadd.f32 %v345, %v356
    %v358 = vrot.slane %v357, 2
    %v359 = vadd.f32 %v357, %v358
    %v360 = vrot.slane %v359, 1
    %v361 = vadd.f32 %v359, %v360
    %v362 = vrot.slane %v346, 4
    %v363 = vadd.f32 %v346, %v362
    %v364 = vrot.slane %v363, 2
    %v365 = vadd.f32 %v363, %v364
    %v366 = vrot.slane %v365, 1
    %v367 = vadd.f32 %v365, %v366
    %v368 = vrot.slane %v347, 4
    %v369 = vadd.f32 %v347, %v368
    %v370 = vrot.slane %v369, 2
    %v371 = vadd.f32 %v369, %v370
    %v372 = vrot.slane %v371, 1
    %v373 = vadd.f32 %v371, %v372
    %v378 = vcombine.low %v355, %v361
    %v379 = vcombine.low %v367, %v373
    %v381 = vunpack.c.l.s4 1966171168
    %v382 = vunpack.c.0.s8 %v381
    %v383 = vlaneseq
    %v384 = vshrl.u32 %v383, 7
    %v385 = vsub.s32 %v382, %v384
    %v386 = vrot.slane %v378, %v385
    %v388 = vunpack.c.l.s4 1966171168
    %v389 = vunpack.c.0.s8 %v388
    %v390 = vlaneseq
    %v391 = vshrl.u32 %v390, 7
    %v392 = vsub.s32 %v389, %v391
    %v393 = vrot.slane %v379, %v392
    %v394 = vcombine.low %v386, %v393
    %v396 = vunpack.c.l.s4 1966171168
    %v397 = vunpack.c.0.s8 %v396
    %v398 = vlaneseq
    %v399 = vshrl.u32 %v398, 7
    %v400 = vsub.s32 %v397, %v399
    %v401 = vrot.slane %v394, %v400
    %v403 = vadd.f32 %v349, %v401
    %404 = vst.msk [vmem:[%s348] ss:$8 sm:$0xf] %vm193, %v403
    %405 = vst.msk [vmem:[%s348] ss:$8 sm:$0x0] %vm193, %v403
    %vm406 = vcmp.eq.s32.totalorder %v119, 4
    %vm407 = vcmp.eq.s32.totalorder %v120, 4
    %vm408 = vcmp.eq.s32.totalorder %v121, 4
    %vm409 = vcmp.eq.s32.totalorder %v122, 4
    %v410 = vsel %vm406, 1, 0
    %v411 = vsel %vm407, 1, 0
    %v412 = vsel %vm408, 1, 0
    %v413 = vsel %vm409, 1, 0
    %v414 = vcvt.s32.f32 %v410
    %v415 = vcvt.s32.f32 %v411
    %v416 = vcvt.s32.f32 %v412
    %v417 = vcvt.s32.f32 %v413
    %s418 = scalar_lea.vmem [#allocation2], 4
    %v419 = vld [vmem:[%s418] ss:$8 sm:$0xf]
    %v420 = vrot.slane %v414, 4
    %v421 = vadd.f32 %v414, %v420
    %v422 = vrot.slane %v421, 2
    %v423 = vadd.f32 %v421, %v422
    %v424 = vrot.slane %v423, 1
    %v425 = vadd.f32 %v423, %v424
    %v426 = vrot.slane %v415, 4
    %v427 = vadd.f32 %v415, %v426
    %v428 = vrot.slane %v427, 2
    %v429 = vadd.f32 %v427, %v428
    %v430 = vrot.slane %v429, 1
    %v431 = vadd.f32 %v429, %v430
    %v432 = vrot.slane %v416, 4
    %v433 = vadd.f32 %v416, %v432
    %v434 = vrot.slane %v433, 2
    %v435 = vadd.f32 %v433, %v434
    %v436 = vrot.slane %v435, 1
    %v437 = vadd.f32 %v435, %v436
    %v438 = vrot.slane %v417, 4
    %v439 = vadd.f32 %v417, %v438
    %v440 = vrot.slane %v439, 2
    %v441 = vadd.f32 %v439, %v440
    %v442 = vrot.slane %v441, 1
    %v443 = vadd.f32 %v441, %v442
    %v448 = vcombine.low %v425, %v431
    %v449 = vcombine.low %v437, %v443
    %v451 = vunpack.c.l.s4 1966171168
    %v452 = vunpack.c.0.s8 %v451
    %v453 = vlaneseq
    %v454 = vshrl.u32 %v453, 7
    %v455 = vsub.s32 %v452, %v454
    %v456 = vrot.slane %v448, %v455
    %v458 = vunpack.c.l.s4 1966171168
    %v459 = vunpack.c.0.s8 %v458
    %v460 = vlaneseq
    %v461 = vshrl.u32 %v460, 7
    %v462 = vsub.s32 %v459, %v461
    %v463 = vrot.slane %v449, %v462
    %v464 = vcombine.low %v456, %v463
    %v466 = vunpack.c.l.s4 1966171168
    %v467 = vunpack.c.0.s8 %v466
    %v468 = vlaneseq
    %v469 = vshrl.u32 %v468, 7
    %v470 = vsub.s32 %v467, %v469
    %v471 = vrot.slane %v464, %v470
    %v473 = vadd.f32 %v419, %v471
    %474 = vst.msk [vmem:[%s418] ss:$8 sm:$0xf] %vm193, %v473
    %475 = vst.msk [vmem:[%s418] ss:$8 sm:$0x0] %vm193, %v473
    %vm476 = vcmp.eq.s32.totalorder %v119, 5
    %vm477 = vcmp.eq.s32.totalorder %v120, 5
    %vm478 = vcmp.eq.s32.totalorder %v121, 5
    %vm479 = vcmp.eq.s32.totalorder %v122, 5
    %v480 = vsel %vm476, 1, 0
    %v481 = vsel %vm477, 1, 0
    %v482 = vsel %vm478, 1, 0
    %v483 = vsel %vm479, 1, 0
    %v484 = vcvt.s32.f32 %v480
    %v485 = vcvt.s32.f32 %v481
    %v486 = vcvt.s32.f32 %v482
    %v487 = vcvt.s32.f32 %v483
    %s488 = scalar_lea.vmem [#allocation2], 5
    %v489 = vld [vmem:[%s488] ss:$8 sm:$0xf]
    %v490 = vrot.slane %v484, 4
    %v491 = vadd.f32 %v484, %v490
    %v492 = vrot.slane %v491, 2
    %v493 = vadd.f32 %v491, %v492
    %v494 = vrot.slane %v493, 1
    %v495 = vadd.f32 %v493, %v494
    %v496 = vrot.slane %v485, 4
    %v497 = vadd.f32 %v485, %v496
    %v498 = vrot.slane %v497, 2
    %v499 = vadd.f32 %v497, %v498
    %v500 = vrot.slane %v499, 1
    %v501 = vadd.f32 %v499, %v500
    %v502 = vrot.slane %v486, 4
    %v503 = vadd.f32 %v486, %v502
    %v504 = vrot.slane %v503, 2
    %v505 = vadd.f32 %v503, %v504
    %v506 = vrot.slane %v505, 1
    %v507 = vadd.f32 %v505, %v506
    %v508 = vrot.slane %v487, 4
    %v509 = vadd.f32 %v487, %v508
    %v510 = vrot.slane %v509, 2
    %v511 = vadd.f32 %v509, %v510
    %v512 = vrot.slane %v511, 1
    %v513 = vadd.f32 %v511, %v512
    %v518 = vcombine.low %v495, %v501
    %v519 = vcombine.low %v507, %v513
    %v521 = vunpack.c.l.s4 1966171168
    %v522 = vunpack.c.0.s8 %v521
    %v523 = vlaneseq
    %v524 = vshrl.u32 %v523, 7
    %v525 = vsub.s32 %v522, %v524
    %v526 = vrot.slane %v518, %v525
    %v528 = vunpack.c.l.s4 1966171168
    %v529 = vunpack.c.0.s8 %v528
    %v530 = vlaneseq
    %v531 = vshrl.u32 %v530, 7
    %v532 = vsub.s32 %v529, %v531
    %v533 = vrot.slane %v519, %v532
    %v534 = vcombine.low %v526, %v533
    %v536 = vunpack.c.l.s4 1966171168
    %v537 = vunpack.c.0.s8 %v536
    %v538 = vlaneseq
    %v539 = vshrl.u32 %v538, 7
    %v540 = vsub.s32 %v537, %v539
    %v541 = vrot.slane %v534, %v540
    %v543 = vadd.f32 %v489, %v541
    %544 = vst.msk [vmem:[%s488] ss:$8 sm:$0xf] %vm193, %v543
    %545 = vst.msk [vmem:[%s488] ss:$8 sm:$0x0] %vm193, %v543
    %vm546 = vcmp.eq.s32.totalorder %v119, 6
    %vm547 = vcmp.eq.s32.totalorder %v120, 6
    %vm548 = vcmp.eq.s32.totalorder %v121, 6
    %vm549 = vcmp.eq.s32.totalorder %v122, 6
    %v550 = vsel %vm546, 1, 0
    %v551 = vsel %vm547, 1, 0
    %v552 = vsel %vm548, 1, 0
    %v553 = vsel %vm549, 1, 0
    %v554 = vcvt.s32.f32 %v550
    %v555 = vcvt.s32.f32 %v551
    %v556 = vcvt.s32.f32 %v552
    %v557 = vcvt.s32.f32 %v553
    %s558 = scalar_lea.vmem [#allocation2], 6
    %v559 = vld [vmem:[%s558] ss:$8 sm:$0xf]
    %v560 = vrot.slane %v554, 4
    %v561 = vadd.f32 %v554, %v560
    %v562 = vrot.slane %v561, 2
    %v563 = vadd.f32 %v561, %v562
    %v564 = vrot.slane %v563, 1
    %v565 = vadd.f32 %v563, %v564
    %v566 = vrot.slane %v555, 4
    %v567 = vadd.f32 %v555, %v566
    %v568 = vrot.slane %v567, 2
    %v569 = vadd.f32 %v567, %v568
    %v570 = vrot.slane %v569, 1
    %v571 = vadd.f32 %v569, %v570
    %v572 = vrot.slane %v556, 4
    %v573 = vadd.f32 %v556, %v572
    %v574 = vrot.slane %v573, 2
    %v575 = vadd.f32 %v573, %v574
    %v576 = vrot.slane %v575, 1
    %v577 = vadd.f32 %v575, %v576
    %v578 = vrot.slane %v557, 4
    %v579 = vadd.f32 %v557, %v578
    %v580 = vrot.slane %v579, 2
    %v581 = vadd.f32 %v579, %v580
    %v582 = vrot.slane %v581, 1
    %v583 = vadd.f32 %v581, %v582
    %v588 = vcombine.low %v565, %v571
    %v589 = vcombine.low %v577, %v583
    %v591 = vunpack.c.l.s4 1966171168
    %v592 = vunpack.c.0.s8 %v591
    %v593 = vlaneseq
    %v594 = vshrl.u32 %v593, 7
    %v595 = vsub.s32 %v592, %v594
    %v596 = vrot.slane %v588, %v595
    %v598 = vunpack.c.l.s4 1966171168
    %v599 = vunpack.c.0.s8 %v598
    %v600 = vlaneseq
    %v601 = vshrl.u32 %v600, 7
    %v602 = vsub.s32 %v599, %v601
    %v603 = vrot.slane %v589, %v602
    %v604 = vcombine.low %v596, %v603
    %v606 = vunpack.c.l.s4 1966171168
    %v607 = vunpack.c.0.s8 %v606
    %v608 = vlaneseq
    %v609 = vshrl.u32 %v608, 7
    %v610 = vsub.s32 %v607, %v609
    %v611 = vrot.slane %v604, %v610
    %v613 = vadd.f32 %v559, %v611
    %614 = vst.msk [vmem:[%s558] ss:$8 sm:$0xf] %vm193, %v613
    %615 = vst.msk [vmem:[%s558] ss:$8 sm:$0x0] %vm193, %v613
    %vm616 = vcmp.eq.s32.totalorder %v119, 7
    %vm617 = vcmp.eq.s32.totalorder %v120, 7
    %vm618 = vcmp.eq.s32.totalorder %v121, 7
    %vm619 = vcmp.eq.s32.totalorder %v122, 7
    %v620 = vsel %vm616, 1, 0
    %v621 = vsel %vm617, 1, 0
    %v622 = vsel %vm618, 1, 0
    %v623 = vsel %vm619, 1, 0
    %v624 = vcvt.s32.f32 %v620
    %v625 = vcvt.s32.f32 %v621
    %v626 = vcvt.s32.f32 %v622
    %v627 = vcvt.s32.f32 %v623
    %s628 = scalar_lea.vmem [#allocation2], 7
    %v629 = vld [vmem:[%s628] ss:$8 sm:$0xf]
    %v630 = vrot.slane %v624, 4
    %v631 = vadd.f32 %v624, %v630
    %v632 = vrot.slane %v631, 2
    %v633 = vadd.f32 %v631, %v632
    %v634 = vrot.slane %v633, 1
    %v635 = vadd.f32 %v633, %v634
    %v636 = vrot.slane %v625, 4
    %v637 = vadd.f32 %v625, %v636
    %v638 = vrot.slane %v637, 2
    %v639 = vadd.f32 %v637, %v638
    %v640 = vrot.slane %v639, 1
    %v641 = vadd.f32 %v639, %v640
    %v642 = vrot.slane %v626, 4
    %v643 = vadd.f32 %v626, %v642
    %v644 = vrot.slane %v643, 2
    %v645 = vadd.f32 %v643, %v644
    %v646 = vrot.slane %v645, 1
    %v647 = vadd.f32 %v645, %v646
    %v648 = vrot.slane %v627, 4
    %v649 = vadd.f32 %v627, %v648
    %v650 = vrot.slane %v649, 2
    %v651 = vadd.f32 %v649, %v650
    %v652 = vrot.slane %v651, 1
    %v653 = vadd.f32 %v651, %v652
    %v658 = vcombine.low %v635, %v641
    %v659 = vcombine.low %v647, %v653
    %v661 = vunpack.c.l.s4 1966171168
    %v662 = vunpack.c.0.s8 %v661
    %v663 = vlaneseq
    %v664 = vshrl.u32 %v663, 7
    %v665 = vsub.s32 %v662, %v664
    %v666 = vrot.slane %v658, %v665
    %v668 = vunpack.c.l.s4 1966171168
    %v669 = vunpack.c.0.s8 %v668
    %v670 = vlaneseq
    %v671 = vshrl.u32 %v670, 7
    %v672 = vsub.s32 %v669, %v671
    %v673 = vrot.slane %v659, %v672
    %v674 = vcombine.low %v666, %v673
    %v676 = vunpack.c.l.s4 1966171168
    %v677 = vunpack.c.0.s8 %v676
    %v678 = vlaneseq
    %v679 = vshrl.u32 %v678, 7
    %v680 = vsub.s32 %v677, %v679
    %v681 = vrot.slane %v674, %v680
    %v683 = vadd.f32 %v629, %v681
    %684 = vst.msk [vmem:[%s628] ss:$8 sm:$0xf] %vm193, %v683
    %685 = vst.msk [vmem:[%s628] ss:$8 sm:$0x0] %vm193, %v683
    %vm686 = vcmp.eq.s32.totalorder %v119, 8
    %vm687 = vcmp.eq.s32.totalorder %v120, 8
    %vm688 = vcmp.eq.s32.totalorder %v121, 8
    %vm689 = vcmp.eq.s32.totalorder %v122, 8
    %v690 = vsel %vm686, 1, 0
    %v691 = vsel %vm687, 1, 0
    %v692 = vsel %vm688, 1, 0
    %v693 = vsel %vm689, 1, 0
    %v694 = vcvt.s32.f32 %v690
    %v695 = vcvt.s32.f32 %v691
    %v696 = vcvt.s32.f32 %v692
    %v697 = vcvt.s32.f32 %v693
    %s698 = scalar_lea.vmem [#allocation2], 32
    %v699 = vld [vmem:[%s698] ss:$8 sm:$0xf]
    %v700 = vrot.slane %v694, 4
    %v701 = vadd.f32 %v694, %v700
    %v702 = vrot.slane %v701, 2
    %v703 = vadd.f32 %v701, %v702
    %v704 = vrot.slane %v703, 1
    %v705 = vadd.f32 %v703, %v704
    %v706 = vrot.slane %v695, 4
    %v707 = vadd.f32 %v695, %v706
    %v708 = vrot.slane %v707, 2
    %v709 = vadd.f32 %v707, %v708
    %v710 = vrot.slane %v709, 1
    %v711 = vadd.f32 %v709, %v710
    %v712 = vrot.slane %v696, 4
    %v713 = vadd.f32 %v696, %v712
    %v714 = vrot.slane %v713, 2
    %v715 = vadd.f32 %v713, %v714
    %v716 = vrot.slane %v715, 1
    %v717 = vadd.f32 %v715, %v716
    %v718 = vrot.slane %v697, 4
    %v719 = vadd.f32 %v697, %v718
    %v720 = vrot.slane %v719, 2
    %v721 = vadd.f32 %v719, %v720
    %v722 = vrot.slane %v721, 1
    %v723 = vadd.f32 %v721, %v722
    %v728 = vcombine.low %v705, %v711
    %v729 = vcombine.low %v717, %v723
    %v731 = vunpack.c.l.s4 1966171168
    %v732 = vunpack.c.0.s8 %v731
    %v733 = vlaneseq
    %v734 = vshrl.u32 %v733, 7
    %v735 = vsub.s32 %v732, %v734
    %v736 = vrot.slane %v728, %v735
    %v738 = vunpack.c.l.s4 1966171168
    %v739 = vunpack.c.0.s8 %v738
    %v740 = vlaneseq
    %v741 = vshrl.u32 %v740, 7
    %v742 = vsub.s32 %v739, %v741
    %v743 = vrot.slane %v729, %v742
    %v744 = vcombine.low %v736, %v743
    %v746 = vunpack.c.l.s4 1966171168
    %v747 = vunpack.c.0.s8 %v746
    %v748 = vlaneseq
    %v749 = vshrl.u32 %v748, 7
    %v750 = vsub.s32 %v747, %v749
    %v751 = vrot.slane %v744, %v750
    %v753 = vadd.f32 %v699, %v751
    %754 = vst.msk [vmem:[%s698] ss:$8 sm:$0xf] %vm193, %v753
    %755 = vst.msk [vmem:[%s698] ss:$8 sm:$0x0] %vm193, %v753
    %vm756 = vcmp.eq.s32.totalorder %v119, 9
    %vm757 = vcmp.eq.s32.totalorder %v120, 9
    %vm758 = vcmp.eq.s32.totalorder %v121, 9
    %vm759 = vcmp.eq.s32.totalorder %v122, 9
    %v760 = vsel %vm756, 1, 0
    %v761 = vsel %vm757, 1, 0
    %v762 = vsel %vm758, 1, 0
    %v763 = vsel %vm759, 1, 0
    %v764 = vcvt.s32.f32 %v760
    %v765 = vcvt.s32.f32 %v761
    %v766 = vcvt.s32.f32 %v762
    %v767 = vcvt.s32.f32 %v763
    %s768 = scalar_lea.vmem [#allocation2], 33
    %v769 = vld [vmem:[%s768] ss:$8 sm:$0xf]
    %v770 = vrot.slane %v764, 4
    %v771 = vadd.f32 %v764, %v770
    %v772 = vrot.slane %v771, 2
    %v773 = vadd.f32 %v771, %v772
    %v774 = vrot.slane %v773, 1
    %v775 = vadd.f32 %v773, %v774
    %v776 = vrot.slane %v765, 4
    %v777 = vadd.f32 %v765, %v776
    %v778 = vrot.slane %v777, 2
    %v779 = vadd.f32 %v777, %v778
    %v780 = vrot.slane %v779, 1
    %v781 = vadd.f32 %v779, %v780
    %v782 = vrot.slane %v766, 4
    %v783 = vadd.f32 %v766, %v782
    %v784 = vrot.slane %v783, 2
    %v785 = vadd.f32 %v783, %v784
    %v786 = vrot.slane %v785, 1
    %v787 = vadd.f32 %v785, %v786
    %v788 = vrot.slane %v767, 4
    %v789 = vadd.f32 %v767, %v788
    %v790 = vrot.slane %v789, 2
    %v791 = vadd.f32 %v789, %v790
    %v792 = vrot.slane %v791, 1
    %v793 = vadd.f32 %v791, %v792
    %v798 = vcombine.low %v775, %v781
    %v799 = vcombine.low %v787, %v793
    %v801 = vunpack.c.l.s4 1966171168
    %v802 = vunpack.c.0.s8 %v801
    %v803 = vlaneseq
    %v804 = vshrl.u32 %v803, 7
    %v805 = vsub.s32 %v802, %v804
    %v806 = vrot.slane %v798, %v805
    %v808 = vunpack.c.l.s4 1966171168
    %v809 = vunpack.c.0.s8 %v808
    %v810 = vlaneseq
    %v811 = vshrl.u32 %v810, 7
    %v812 = vsub.s32 %v809, %v811
    %v813 = vrot.slane %v799, %v812
    %v814 = vcombine.low %v806, %v813
    %v816 = vunpack.c.l.s4 1966171168
    %v817 = vunpack.c.0.s8 %v816
    %v818 = vlaneseq
    %v819 = vshrl.u32 %v818, 7
    %v820 = vsub.s32 %v817, %v819
    %v821 = vrot.slane %v814, %v820
    %v823 = vadd.f32 %v769, %v821
    %824 = vst.msk [vmem:[%s768] ss:$8 sm:$0xf] %vm193, %v823
    %825 = vst.msk [vmem:[%s768] ss:$8 sm:$0x0] %vm193, %v823
    // Predicated region
    $region26: #{tpu_custom_call.1} parent=1 // pred_check
      %p826 = pneg %p40
    $region27: #{tpu_custom_call.1} parent=1 // pred_check_branch
      %828 = sbr.rel (%p826) target = $region29
    $region28: #{tpu_custom_call.1} parent=1 // pred_region
      %v829 = vld [vmem:[#allocation2] sm:$0xff]
      %v830 = vld [vmem:[#allocation2 + $0x8] sm:$0xff]
      %v831 = vld [vmem:[#allocation2 + $0x10] sm:$0xff]
      %v832 = vld [vmem:[#allocation2 + $0x18] sm:$0xff]
      %v833 = vld [vmem:[#allocation2 + $0x20] sm:$0x3]
      %v834 = vld [vmem:[#allocation2 + $0x28] sm:$0x3]
      %v835 = vld [vmem:[#allocation2 + $0x30] sm:$0x3]
      %v836 = vld [vmem:[#allocation2 + $0x38] sm:$0x3]
      %v837 = vadd.f32 %v829, %v830
      %v838 = vadd.f32 %v837, %v831
      %v839 = vadd.f32 %v838, %v832
      %840 = vadd.xlane.f32.xlu0 %v839
      %v841 = vpop.xlane.xlu0 %840
      %vm842 = vcmask 1041408
      %v843 = vsel %vm842, %v833, 0.0
      %v844 = vsel %vm842, %v834, 0.0
      %v845 = vadd.f32 %v843, %v844
      %v846 = vsel %vm842, %v835, 0.0
      %v847 = vadd.f32 %v845, %v846
      %v848 = vsel %vm842, %v836, 0.0
      %v849 = vadd.f32 %v847, %v848
      %850 = vadd.xlane.f32.xlu0 %v849
      %v851 = vpop.xlane.xlu0 %850
      %vm852 = vcmask 7168
      %853 = vst.msk [vmem:[%s3] sm:$0xff] %vm852, %v841
      %vm854 = vcmask 1024
      %855 = vst.msk [vmem:[%s3 + $0x8] sm:$0x3] %vm854, %v851
      %vm856 = vcmp.gt.f32.partialorder %v841, 0.0
      %vm857 = vcmp.gt.f32.partialorder %v851, 0.0
      %v858 = vsel %vm856, 1, 0
      %v859 = vsel %vm857, 1, 0
      %v860 = vcvt.s32.f32 %v858
      %v861 = vcvt.s32.f32 %v859
      %v862 = vsel %vm842, %v861, 0.0
      %v863 = vadd.f32 %v860, %v862
      %v864 = vrot.slane %v863, 4
      %v865 = vadd.f32 %v863, %v864
      %v866 = vrot.slane %v865, 2
      %v867 = vadd.f32 %v865, %v866
      %v868 = vrot.slane %v867, 1
      %v869 = vadd.f32 %v867, %v868
      %v870 = vmul.f32 %v841, %v869
      %v871 = vmul.f32 %v851, %v869
      %v872 = vmax.f32 %v870, 0.0001
      %v873 = vmax.f32 %v871, 0.0001
      %v874 = vrcp.pop %v872
      %v875 = vmul.f32 256.0, %v874
      %v876 = vrcp.pop %v873
      %v877 = vmul.f32 256.0, %v876
      %878 = vst.msk [vmem:[%s4] sm:$0xff] %vm852, %v875
      %879 = vst.msk [vmem:[%s4 + $0x8] sm:$0x3] %vm854, %v877
    $region29: #{tpu_custom_call.1} parent=1 // pred_fallthru
      _
    // Predicated region
    $region30: #{tpu_custom_call.1} parent=1 // pred_check
      _
    $region31: #{tpu_custom_call.1} parent=1 // pred_check_branch
      %881 = sbr.rel (0) target = $region33
    $region32: #{tpu_custom_call.1} parent=1 // pred_region
      _
    $region33: #{tpu_custom_call.1} parent=1 // pred_fallthru
      _
    // Predicated region
    $region34: #{tpu_custom_call.1} parent=1 // pred_check
      _
    $region35: #{tpu_custom_call.1} parent=1 // pred_check_branch
      %883 = sbr.rel (0) target = $region37
    $region36: #{tpu_custom_call.1} parent=1 // pred_region
      _
    $region37: #{tpu_custom_call.1} parent=1 // pred_fallthru
      _
    // Predicated region
    $region38: #{tpu_custom_call.1} parent=1 // pred_check
      _
    $region39: #{tpu_custom_call.1} parent=1 // pred_check_branch
      %885 = sbr.rel (0) target = $region41
    $region40: #{tpu_custom_call.1} parent=1 // pred_region
      _
    $region41: #{tpu_custom_call.1} parent=1 // pred_fallthru
      _
    // Predicated region
    $region42: #{tpu_custom_call.1} parent=1 // pred_check
      _
    $region43: #{tpu_custom_call.1} parent=1 // pred_check_branch
      %887 = sbr.rel (0) target = $region45
    $region44: #{tpu_custom_call.1} parent=1 // pred_region
      _
    $region45: #{tpu_custom_call.1} parent=1 // pred_fallthru
      _
    %888 = vsyncpa [#allocation4], 1
    %889 = vsyncpa [#allocation6], 1

</llo_original>
